<compile_context>
chip_gen: v7x
topology: tpu7x:2x2x1
jax: 0.10.0
libtpu: 0.0.40
codegen_flags: <defaults>
</compile_context>

<pallas_src>
from functools import partial

import numpy as np
import jax
import jax.numpy as jnp
from jax.experimental import pallas as pl
from jax.experimental.pallas import tpu as pltpu


# ----------------------------------------------------------------------------
# Kernel 1: block-center sampling -> dilation -> renormalized keep mask.
# Runs once per forward on a tiny (N, H, W) problem; output values are
# 0.0 (dropped) or norm = N*H*W / keep_count (kept).
# ----------------------------------------------------------------------------
def _dropblock_mask_kernel(gamma_ref, u_ref, mask_ref, *, pad):
    """gamma_ref: (1,) f32 SMEM; u_ref: (N*H, W) f32 VMEM uniforms;
    mask_ref: (N, H, W) f32 VMEM output (scaled keep mask)."""
    N, H, W = mask_ref.shape
    gamma = gamma_ref[0]

    # Bernoulli(gamma) block centers.  bf16 is exact for 0/1 values and the
    # box sums below (<= block_size**2), and runs at full MXU rate.
    centers = (u_ref[...] < gamma).astype(jnp.bfloat16)          # (N*H, W)

    # Band matrices built in-kernel (no extra HBM inputs / DMAs).
    ih = jax.lax.broadcasted_iota(jnp.int32, (H, H), 0)
    jh = jax.lax.broadcasted_iota(jnp.int32, (H, H), 1)
    band_h = (jnp.abs(ih - jh) <= pad).astype(jnp.bfloat16)
    iw = jax.lax.broadcasted_iota(jnp.int32, (W, W), 0)
    jw = jax.lax.broadcasted_iota(jnp.int32, (W, W), 1)
    band_w = (jnp.abs(iw - jw) <= pad).astype(jnp.bfloat16)

    # Box max-pool of a binary mask == (banded box-sum > 0).
    # W-direction box-sum for ALL N*H rows in one batched matmul.
    row_sum = jnp.dot(centers, band_w,
                      preferred_element_type=jnp.float32)        # (N*H, W)

    # H-direction box-sum per sample (trace-time loop; N is small and this
    # pass is tiny compared to the streaming apply pass).
    keep_acc = jnp.zeros((H, W), jnp.float32)
    for n in range(N):
        rows_n = row_sum[n * H:(n + 1) * H, :].astype(jnp.bfloat16)   # (H, W)
        box_n = jnp.dot(band_h, rows_n,
                        preferred_element_type=jnp.float32)           # (H, W)
        keep_n = (box_n < 0.5).astype(jnp.float32)                    # 1.0 = keep
        mask_ref[n] = keep_n
        keep_acc = keep_acc + keep_n

    # Single cross-lane reduction; guard against "everything dropped".
    total_keep = jnp.sum(keep_acc)
    norm = jnp.float32(N * H * W) / jnp.maximum(total_keep, jnp.float32(1.0))

    # Fold the renormalization into the mask so the apply pass needs no extra
    # scalar plumbing: mask values become {0, norm}.
    for n in range(N):
        mask_ref[n] = mask_ref[n] * norm


# ----------------------------------------------------------------------------
# Kernel 2: memory-bound elementwise apply, gridded + pipelined.
# ----------------------------------------------------------------------------
def _dropblock_apply_kernel(x_ref, m_ref, o_ref):
    # x_ref: (1, c_tile, H*W); m_ref: (1, 1, H*W); broadcast over channels.
    o_ref[...] = (x_ref[...] * m_ref[...]).astype(o_ref.dtype)


def _pick_c_tile(C, hw, itemsize, target_bytes=2 << 20):
    """Largest channel tile that divides C, is a multiple of 8 when < C, and
    keeps a (1, c_tile, hw) activation tile under ~target_bytes."""
    if C * hw * itemsize <= target_bytes:
        return C
    best = 0
    ct = 8
    while ct < C:
        if C % ct == 0 and ct * hw * itemsize <= target_bytes:
            best = ct
        ct += 8
    return best if best > 0 else C


@partial(jax.jit, static_argnames=("block_size",))
def _dropblock_forward(x, seed, gamma, *, block_size):
    N, C, H, W = x.shape
    hw = H * W
    pad = block_size // 2

    # Bernoulli uniforms for the block centers (shared across channels).
    # Generated with the standard JAX PRNG and passed into the kernel, since
    # pltpu.prng_* has no interpret-mode lowering.
    key = jax.random.PRNGKey(seed)
    u = jax.random.uniform(key, (N * H, W), dtype=jnp.float32)

    gamma_arr = jnp.asarray(gamma, dtype=jnp.float32).reshape((1,))

    # --- pass 1: build the scaled keep mask (tiny, un-gridded) --------------
    mask = pl.pallas_call(
        partial(_dropblock_mask_kernel, pad=pad),
        out_shape=jax.ShapeDtypeStruct((N, H, W), jnp.float32),
        in_specs=[
            pl.BlockSpec(memory_space=pltpu.MemorySpace.SMEM),   # gamma
            pl.BlockSpec(memory_space=pltpu.MemorySpace.VMEM),   # uniforms
        ],
        out_specs=pl.BlockSpec(memory_space=pltpu.MemorySpace.VMEM),
    )(gamma_arr, u)

    # --- pass 2: stream activations through VMEM, lane-dense layout ---------
    # Collapse H,W so the last (lane) dim is H*W instead of W (layout no-op on
    # row-major arrays); grid over (N, C-tiles) gives HBM<->VMEM pipelining.
    x3 = x.reshape(N, C, hw)
    m3 = mask.reshape(N, 1, hw)

    c_tile = _pick_c_tile(C, hw, x.dtype.itemsize)
    grid = (N, C // c_tile)

    x_tile_bytes = c_tile * hw * x.dtype.itemsize
    mask_tile_bytes = hw * 4
    vmem_limit = 2 * (2 * x_tile_bytes + mask_tile_bytes) + (4 << 20)
    vmem_limit = int(min(max(vmem_limit, 8 << 20), 32 << 20))

    out3 = pl.pallas_call(
        _dropblock_apply_kernel,
        out_shape=jax.ShapeDtypeStruct((N, C, hw), x.dtype),
        grid=grid,
        in_specs=[
            pl.BlockSpec((1, c_tile, hw), lambda n, c: (n, c, 0)),
            pl.BlockSpec((1, 1, hw), lambda n, c: (n, 0, 0)),
        ],
        out_specs=pl.BlockSpec((1, c_tile, hw), lambda n, c: (n, c, 0)),
        compiler_params=pltpu.CompilerParams(
            dimension_semantics=("parallel", "parallel"),
            vmem_limit_bytes=vmem_limit,
        ),
    )(x3, m3)

    return out3.reshape(N, C, H, W)


class DropBlock2D:
    """DropBlock regularizer (miguelvr-style), forward implemented in Pallas."""

    def __init__(self, drop_rate: float, block_size: int):
        self.drop_rate = float(drop_rate)
        self.block_size = int(block_size)
        self.training = True
        self._seed = 0
        # TODO(synk): even block_size needs the extra [:-1, :-1] crop of the
        # max-pooled mask (as in the torch impl); only odd block_size supported.
        assert self.block_size % 2 == 1, "only odd block_size supported"

    def __call__(self, x):
        if (not self.training) or float(self.drop_rate) == 0.0:
            return x
        seed = self._seed
        self._seed += 1
        gamma = float(self.drop_rate) / float(self.block_size ** 2)
        return _dropblock_forward(
            x, jnp.int32(seed), jnp.float32(gamma), block_size=self.block_size)


class LinearScheduler:
    """Linear scheduler for the drop rate — mirrors the PyTorch module."""

    def __init__(self, drop_layer, start_value: float, stop_value: float, nr_steps: int):
        self.drop_layer = drop_layer
        self.i = 0
        self.drop_values = np.linspace(start=start_value, stop=stop_value, num=int(nr_steps))

    def forward(self, x):
        return self.drop_layer(x)

    __call__ = forward

    def step(self):
        if self.i < len(self.drop_values):
            self.drop_layer.drop_rate = float(self.drop_values[self.i])
        self.i += 1


def _dropblock_reference(x, seed, gamma, block_size):
    """Pure-JAX reference (mirrors torch DropBlock2D) for a correctness check."""
    N, C, H, W = x.shape
    key = jax.random.PRNGKey(seed)
    u = jax.random.uniform(key, (N * H, W), dtype=jnp.float32).reshape(N, H, W)
    centers = (u < jnp.float32(gamma)).astype(jnp.float32)
    pad = block_size // 2
    pooled = jax.lax.reduce_window(
        centers, -jnp.inf, jax.lax.max,
        (1, block_size, block_size), (1, 1, 1),
        [(0, 0), (pad, pad), (pad, pad)])
    keep = 1.0 - (pooled > 0).astype(jnp.float32)
    norm = jnp.float32(keep.size) / jnp.maximum(jnp.sum(keep), 1.0)
    return x * keep[:, None, :, :] * norm


if __name__ == "__main__":
    key = jax.random.PRNGKey(0)
    x = jax.random.normal(key, (2, 4, 16, 16), dtype=jnp.float32)

    drop = DropBlock2D(drop_rate=0.0, block_size=3)
    sched = LinearScheduler(drop, start_value=0.0, stop_value=0.25, nr_steps=5)

    # drop_rate == 0 path (identity, matches `if drop_rate == 0.: return x`)
    y0 = sched.forward(x)
    jax.block_until_ready(y0)
    assert y0.shape == x.shape and y0.dtype == x.dtype
    assert bool(jnp.allclose(y0, x))

    # advance the schedule so the DropBlock kernels actually run
    for _ in range(3):
        sched.step()

    seed_used = drop._seed
    gamma_used = float(drop.drop_rate) / float(drop.block_size ** 2)

    y = sched.forward(x)
    jax.block_until_ready(y)
    assert y.shape == x.shape and y.dtype == x.dtype
    assert bool(jnp.all(jnp.isfinite(y)))

    # check against the pure-JAX DropBlock reference
    y_ref = _dropblock_reference(x, seed_used, gamma_used, drop.block_size)
    assert bool(jnp.allclose(y, y_ref, rtol=1e-5, atol=1e-6))

    print("KERNEL_OK")
</pallas_src>

<mosaic_0001>
module attributes {stable_mosaic.version = 11 : i64} {
  func.func @_dropblock_mask_kernel(%arg0: memref<1xf32, #tpu.memory_space<smem>>, %arg1: memref<32x16xf32, #tpu.memory_space<vmem>>, %arg2: memref<2x16x16xf32, #tpu.memory_space<vmem>>) attributes {dimension_semantics = [], scalar_prefetch = 0 : i64, scratch_operands = 0 : i64, tpu.core_type = #tpu.core_type<tc>} {
    %c0 = arith.constant 0 : index
    %0 = memref.load %arg0[%c0] : memref<1xf32, #tpu.memory_space<smem>>
    %c0_0 = arith.constant 0 : index
    %c0_1 = arith.constant 0 : index
    %1 = vector.load %arg1[%c0_0, %c0_1] : memref<32x16xf32, #tpu.memory_space<vmem>>, vector<32x16xf32>
    %2 = vector.broadcast %0 : f32 to vector<32x16xf32>
    %3 = arith.cmpf olt, %1, %2 : vector<32x16xf32>
    %4 = arith.extui %3 : vector<32x16xi1> to vector<32x16xi32>
    %5 = arith.sitofp %4 : vector<32x16xi32> to vector<32x16xf32>
    %6 = arith.truncf %5 : vector<32x16xf32> to vector<32x16xbf16>
    %7 = tpu.iota {dimensions = array<i32: 0>} : vector<16x16xi32>
    %8 = tpu.iota {dimensions = array<i32: 1>} : vector<16x16xi32>
    %9 = arith.subi %7, %8 : vector<16x16xi32>
    %10 = math.absi %9 : vector<16x16xi32>
    %c1_i32 = arith.constant 1 : i32
    %11 = vector.broadcast %c1_i32 : i32 to vector<16x16xi32>
    %12 = arith.cmpi sle, %10, %11 : vector<16x16xi32>
    %13 = arith.extui %12 : vector<16x16xi1> to vector<16x16xi32>
    %14 = arith.sitofp %13 : vector<16x16xi32> to vector<16x16xf32>
    %15 = arith.truncf %14 : vector<16x16xf32> to vector<16x16xbf16>
    %16 = tpu.iota {dimensions = array<i32: 0>} : vector<16x16xi32>
    %17 = tpu.iota {dimensions = array<i32: 1>} : vector<16x16xi32>
    %18 = arith.subi %16, %17 : vector<16x16xi32>
    %19 = math.absi %18 : vector<16x16xi32>
    %c1_i32_2 = arith.constant 1 : i32
    %20 = vector.broadcast %c1_i32_2 : i32 to vector<16x16xi32>
    %21 = arith.cmpi sle, %19, %20 : vector<16x16xi32>
    %22 = arith.extui %21 : vector<16x16xi1> to vector<16x16xi32>
    %23 = arith.sitofp %22 : vector<16x16xi32> to vector<16x16xf32>
    %24 = arith.truncf %23 : vector<16x16xf32> to vector<16x16xbf16>
    %cst = arith.constant dense<0.000000e+00> : vector<32x16xf32>
    %25 = tpu.matmul %6, %24, %cst {dimension_numbers = #tpu.dot_dimension_numbers<[1], [0], [0], [1], [0, 0, 1, 1], [], []>} : vector<32x16xbf16>, vector<16x16xbf16>, vector<32x16xf32> -> vector<32x16xf32>
    %cst_3 = arith.constant 0.000000e+00 : f32
    %26 = vector.broadcast %cst_3 : f32 to vector<16x16xf32>
    %27 = vector.extract_strided_slice %25 {offsets = [0, 0], sizes = [16, 16], strides = [1, 1]} : vector<32x16xf32> to vector<16x16xf32>
    %28 = arith.truncf %27 : vector<16x16xf32> to vector<16x16xbf16>
    %cst_4 = arith.constant dense<0.000000e+00> : vector<16x16xf32>
    %29 = tpu.matmul %15, %28, %cst_4 {dimension_numbers = #tpu.dot_dimension_numbers<[1], [0], [0], [1], [0, 0, 1, 1], [], []>} : vector<16x16xbf16>, vector<16x16xbf16>, vector<16x16xf32> -> vector<16x16xf32>
    %cst_5 = arith.constant 5.000000e-01 : f32
    %30 = vector.broadcast %cst_5 : f32 to vector<16x16xf32>
    %31 = arith.cmpf olt, %29, %30 : vector<16x16xf32>
    %32 = arith.extui %31 : vector<16x16xi1> to vector<16x16xi32>
    %33 = arith.sitofp %32 : vector<16x16xi32> to vector<16x16xf32>
    %c0_6 = arith.constant 0 : index
    %c0_7 = arith.constant 0 : index
    %c0_8 = arith.constant 0 : index
    %34 = vector.load %arg2[%c0_6, %c0_7, %c0_8] : memref<2x16x16xf32, #tpu.memory_space<vmem>>, vector<1x16x16xf32>
    %35 = vector.shape_cast %34 : vector<1x16x16xf32> to vector<16x16xf32>
    %36 = vector.shape_cast %33 : vector<16x16xf32> to vector<1x16x16xf32>
    tpu.vector_store %arg2[%c0_6, %c0_7, %c0_8], %36 {strides = array<i32>} : memref<2x16x16xf32, #tpu.memory_space<vmem>>, vector<1x16x16xf32>,
    %37 = arith.addf %26, %33 : vector<16x16xf32>
    %38 = vector.extract_strided_slice %25 {offsets = [16, 0], sizes = [16, 16], strides = [1, 1]} : vector<32x16xf32> to vector<16x16xf32>
    %39 = arith.truncf %38 : vector<16x16xf32> to vector<16x16xbf16>
    %cst_9 = arith.constant dense<0.000000e+00> : vector<16x16xf32>
    %40 = tpu.matmul %15, %39, %cst_9 {dimension_numbers = #tpu.dot_dimension_numbers<[1], [0], [0], [1], [0, 0, 1, 1], [], []>} : vector<16x16xbf16>, vector<16x16xbf16>, vector<16x16xf32> -> vector<16x16xf32>
    %cst_10 = arith.constant 5.000000e-01 : f32
    %41 = vector.broadcast %cst_10 : f32 to vector<16x16xf32>
    %42 = arith.cmpf olt, %40, %41 : vector<16x16xf32>
    %43 = arith.extui %42 : vector<16x16xi1> to vector<16x16xi32>
    %44 = arith.sitofp %43 : vector<16x16xi32> to vector<16x16xf32>
    %c1 = arith.constant 1 : index
    %c0_11 = arith.constant 0 : index
    %c0_12 = arith.constant 0 : index
    %45 = vector.load %arg2[%c1, %c0_11, %c0_12] : memref<2x16x16xf32, #tpu.memory_space<vmem>>, vector<1x16x16xf32>
    %46 = vector.shape_cast %45 : vector<1x16x16xf32> to vector<16x16xf32>
    %47 = vector.shape_cast %44 : vector<16x16xf32> to vector<1x16x16xf32>
    tpu.vector_store %arg2[%c1, %c0_11, %c0_12], %47 {strides = array<i32>} : memref<2x16x16xf32, #tpu.memory_space<vmem>>, vector<1x16x16xf32>,
    %48 = arith.addf %37, %44 : vector<16x16xf32>
    %49 = vector.shape_cast %48 : vector<16x16xf32> to vector<1x16x16xf32>
    %cst_13 = arith.constant dense<0.000000e+00> : vector<1xf32>
    %50 = vector.multi_reduction <add>, %49, %cst_13 [1, 2] : vector<1x16x16xf32> to vector<1xf32>
    %51 = vector.shape_cast %50 : vector<1xf32> to vector<1x1x1xf32>
    %52 = vector.extract %51[0, 0, 0] : f32 from vector<1x1x1xf32>
    %cst_14 = arith.constant 1.000000e+00 : f32
    %53 = arith.maximumf %52, %cst_14 : f32
    %cst_15 = arith.constant 5.120000e+02 : f32
    %54 = arith.divf %cst_15, %53 : f32
    %c0_16 = arith.constant 0 : index
    %c0_17 = arith.constant 0 : index
    %c0_18 = arith.constant 0 : index
    %55 = vector.load %arg2[%c0_16, %c0_17, %c0_18] : memref<2x16x16xf32, #tpu.memory_space<vmem>>, vector<1x16x16xf32>
    %56 = vector.shape_cast %55 : vector<1x16x16xf32> to vector<16x16xf32>
    %57 = vector.broadcast %54 : f32 to vector<16x16xf32>
    %58 = arith.mulf %56, %57 : vector<16x16xf32>
    %c0_19 = arith.constant 0 : index
    %c0_20 = arith.constant 0 : index
    %c0_21 = arith.constant 0 : index
    %59 = vector.load %arg2[%c0_19, %c0_20, %c0_21] : memref<2x16x16xf32, #tpu.memory_space<vmem>>, vector<1x16x16xf32>
    %60 = vector.shape_cast %59 : vector<1x16x16xf32> to vector<16x16xf32>
    %61 = vector.shape_cast %58 : vector<16x16xf32> to vector<1x16x16xf32>
    tpu.vector_store %arg2[%c0_19, %c0_20, %c0_21], %61 {strides = array<i32>} : memref<2x16x16xf32, #tpu.memory_space<vmem>>, vector<1x16x16xf32>,
    %c1_22 = arith.constant 1 : index
    %c0_23 = arith.constant 0 : index
    %c0_24 = arith.constant 0 : index
    %62 = vector.load %arg2[%c1_22, %c0_23, %c0_24] : memref<2x16x16xf32, #tpu.memory_space<vmem>>, vector<1x16x16xf32>
    %63 = vector.shape_cast %62 : vector<1x16x16xf32> to vector<16x16xf32>
    %64 = vector.broadcast %54 : f32 to vector<16x16xf32>
    %65 = arith.mulf %63, %64 : vector<16x16xf32>
    %c1_25 = arith.constant 1 : index
    %c0_26 = arith.constant 0 : index
    %c0_27 = arith.constant 0 : index
    %66 = vector.load %arg2[%c1_25, %c0_26, %c0_27] : memref<2x16x16xf32, #tpu.memory_space<vmem>>, vector<1x16x16xf32>
    %67 = vector.shape_cast %66 : vector<1x16x16xf32> to vector<16x16xf32>
    %68 = vector.shape_cast %65 : vector<16x16xf32> to vector<1x16x16xf32>
    tpu.vector_store %arg2[%c1_25, %c0_26, %c0_27], %68 {strides = array<i32>} : memref<2x16x16xf32, #tpu.memory_space<vmem>>, vector<1x16x16xf32>,
    return
  }
}

module attributes {stable_mosaic.version = 11 : i64} {
  func.func @_dropblock_apply_kernel(%arg0: i32, %arg1: i32, %arg2: memref<1x4x256xf32, #tpu.memory_space<vmem>>, %arg3: memref<1x1x256xf32, #tpu.memory_space<vmem>>, %arg4: memref<1x4x256xf32, #tpu.memory_space<vmem>>) attributes {dimension_semantics = [#tpu.dimension_semantics<parallel>, #tpu.dimension_semantics<parallel>], iteration_bounds = array<i64: 2, 1>, scalar_prefetch = 0 : i64, scratch_operands = 0 : i64, tpu.core_type = #tpu.core_type<tc>, window_params = [{transform_indices = @transform_0, window_bounds = array<i64: 1, 4, 256>}, {transform_indices = @transform_1, window_bounds = array<i64: 1, 1, 256>}, {transform_indices = @transform_2, window_bounds = array<i64: 1, 4, 256>}]} {
    %c0 = arith.constant 0 : index
    %c0_0 = arith.constant 0 : index
    %c0_1 = arith.constant 0 : index
    %0 = vector.load %arg2[%c0, %c0_0, %c0_1] : memref<1x4x256xf32, #tpu.memory_space<vmem>>, vector<1x4x256xf32>
    %c0_2 = arith.constant 0 : index
    %c0_3 = arith.constant 0 : index
    %c0_4 = arith.constant 0 : index
    %1 = vector.load %arg3[%c0_2, %c0_3, %c0_4] : memref<1x1x256xf32, #tpu.memory_space<vmem>>, vector<1x1x256xf32>
    %2 = vector.broadcast %1 : vector<1x1x256xf32> to vector<1x4x256xf32>
    %3 = arith.mulf %0, %2 : vector<1x4x256xf32>
    %c0_5 = arith.constant 0 : index
    %c0_6 = arith.constant 0 : index
    %c0_7 = arith.constant 0 : index
    %4 = vector.load %arg4[%c0_5, %c0_6, %c0_7] : memref<1x4x256xf32, #tpu.memory_space<vmem>>, vector<1x4x256xf32>
    tpu.vector_store %arg4[%c0_5, %c0_6, %c0_7], %3 {strides = array<i32>} : memref<1x4x256xf32, #tpu.memory_space<vmem>>, vector<1x4x256xf32>,
    return
  }
  func.func @transform_0(%arg0: i32, %arg1: i32) -> (i32, i32, i32) {
    %c0_i32 = arith.constant 0 : i32
    %c0_i32_0 = arith.constant 0 : i32
    return %arg0, %arg1, %c0_i32 : i32, i32, i32
  }
  func.func @transform_1(%arg0: i32, %arg1: i32) -> (i32, i32, i32) {
    %c0_i32 = arith.constant 0 : i32
    %c0_i32_0 = arith.constant 0 : i32
    %c0_i32_1 = arith.constant 0 : i32
    return %arg0, %c0_i32, %c0_i32_0 : i32, i32, i32
  }
  func.func @transform_2(%arg0: i32, %arg1: i32) -> (i32, i32, i32) {
    %c0_i32 = arith.constant 0 : i32
    %c0_i32_0 = arith.constant 0 : i32
    return %arg0, %arg1, %c0_i32 : i32, i32, i32
  }
}

</mosaic_0001>

<llo_original>
// kernel: _dropblock_forward.3
$region0: #{_dropblock_forward.3}
  #allocation0 [shape = 'u32[]', space=smem, size = 0x4, offset = 0x4, fixed_abs, tag = 'smem constant byte address 0x4 - core index']
  #allocation1 [shape = 'u32[144,128]{1,0:T(1,128)}', space=vmem, size = 0x12000, scoped, tag = 'internal scratch']
  %s0 = inlined_call_operand.vmem [shape: f32[2,4,256], index: 0, kind: input, shape index: {}]
  %s1 = inlined_call_operand.vmem [shape: f32[2,1,256], index: 1, kind: input, shape index: {}]
  %s2 = inlined_call_operand.vmem [shape: f32[2,4,256], index: 2, kind: output, shape index: {}]
  %s3 = sld [smem:[#allocation0]]
  $region41: #{_dropblock_forward.3} parent=0
    _
  %s5 = ssub.s32 1, %s3
  %s6 = scalar_select 0, %s5, %s3
  loop: start=0, step=1, limit=4
  $region2: #{_dropblock_forward.3} parent=0 // loop_pre_header
    _
  $region3: #{_dropblock_forward.3} parent=0 // loop_header
    %s8 = sphi 0, %s12
    %p9 = scmp.ge.s32.totalorder %s8, 4
    %s15 = sphi 0, %s27
    %s16 = sphi 0, %s23
    %s17 = sphi 0, %s15
    %s18 = sphi 0, %s16
    %s19 = sphi 0, %s17
    %s20 = sphi 0, %s18
    %s32 = sphi 0, %s34
    %s35 = sphi 0, %s32
    %s36 = sphi 0, %s35
    %s52 = sphi 0, %s36
    %s58 = sphi 0, %s60
    %s61 = sphi 0, %s58
    %s62 = sphi 0, %s61
    %s78 = sphi 0, %s62
    %s86 = sphi 0, %s88
    %s89 = sphi 0, %s86
    %s90 = sphi 0, %s89
    %s106 = sphi 0, %s90
  $region4: #{_dropblock_forward.3} parent=0 // loop_header_branch
    %11 = sbr.rel (%p9) target = $region8
  $region5: #{_dropblock_forward.3} parent=0 // loop_body
    %s13 = ssub.s32 %s8, 1
    %s14 = ssub.s32 %s8, 2
    %s21 = sadd.s32 1, %s16
    %p22 = scmp.ge.s32.totalorder %s21, 1
    %s23 = scalar_select %p22, 0, %s21
    %s24 = sadd.s32 1, %s15
    %s25 = scalar_select %p22, %s24, %s15
    %p26 = scmp.ge.s32.totalorder %s25, 2
    %s27 = scalar_select %p26, 0, %s25
    %s28 = ssub.s32 %s15, %s27
    %s29 = ssub.s32 %s16, %s23
    %s30 = sor.u32 %s28, %s29
    %p31 = scmp.eq.s32.totalorder %s30, 0
    %s33 = sadd.s32 %s32, 1
    %s34 = scalar_select %p31, %s32, %s33
    %p37 = pneg %p31
    %p38 = scmp.eq.s32.totalorder %s8, 1
    %p39 = por %p37, %p38
    %p40 = scmp.ne.s32.totalorder %s32, %s35
    %p41 = scmp.eq.s32.totalorder %s8, 0
    %p42 = por %p40, %p41
    %p43 = scmp.ne.s32.totalorder %s32, %s35
    %p44 = scmp.eq.s32.totalorder %s13, 1
    %p45 = por %p43, %p44
    %p46 = scmp.ne.s32.totalorder %s35, %s36
    %p47 = scmp.eq.s32.totalorder %s13, 0
    %p48 = por %p46, %p47
    %p49 = scmp.ne.s32.totalorder %s35, %s36
    %p50 = scmp.eq.s32.totalorder %s14, 1
    %p51 = por %p49, %p50
    %p53 = scmp.ne.s32.totalorder %s36, %s52
    %p54 = scmp.eq.s32.totalorder %s14, 0
    %p55 = por %p53, %p54
    %s56 = ssub.s32 %s15, %s27
    %p57 = scmp.eq.s32.totalorder %s56, 0
    %s59 = sadd.s32 %s58, 1
    %s60 = scalar_select %p57, %s58, %s59
    %p63 = pneg %p57
    %p64 = scmp.eq.s32.totalorder %s8, 1
    %p65 = por %p63, %p64
    %p66 = scmp.ne.s32.totalorder %s58, %s61
    %p67 = scmp.eq.s32.totalorder %s8, 0
    %p68 = por %p66, %p67
    %p69 = scmp.ne.s32.totalorder %s58, %s61
    %p70 = scmp.eq.s32.totalorder %s13, 1
    %p71 = por %p69, %p70
    %p72 = scmp.ne.s32.totalorder %s61, %s62
    %p73 = scmp.eq.s32.totalorder %s13, 0
    %p74 = por %p72, %p73
    %p75 = scmp.ne.s32.totalorder %s61, %s62
    %p76 = scmp.eq.s32.totalorder %s14, 1
    %p77 = por %p75, %p76
    %p79 = scmp.ne.s32.totalorder %s62, %s78
    %p80 = scmp.eq.s32.totalorder %s14, 0
    %p81 = por %p79, %p80
    %s82 = ssub.s32 %s15, %s27
    %s83 = ssub.s32 %s16, %s23
    %s84 = sor.u32 %s82, %s83
    %p85 = scmp.eq.s32.totalorder %s84, 0
    %s87 = sadd.s32 %s86, 1
    %s88 = scalar_select %p85, %s86, %s87
    %p91 = pneg %p85
    %p92 = scmp.eq.s32.totalorder %s8, 1
    %p93 = por %p91, %p92
    %p94 = scmp.ne.s32.totalorder %s86, %s89
    %p95 = scmp.eq.s32.totalorder %s8, 0
    %p96 = por %p94, %p95
    %p97 = scmp.ne.s32.totalorder %s86, %s89
    %p98 = scmp.eq.s32.totalorder %s13, 1
    %p99 = por %p97, %p98
    %p100 = scmp.ne.s32.totalorder %s89, %s90
    %p101 = scmp.eq.s32.totalorder %s13, 0
    %p102 = por %p100, %p101
    %p103 = scmp.ne.s32.totalorder %s89, %s90
    %p104 = scmp.eq.s32.totalorder %s14, 1
    %p105 = por %p103, %p104
    %p107 = scmp.ne.s32.totalorder %s90, %s106
    %p108 = scmp.eq.s32.totalorder %s14, 0
    %p109 = por %p107, %p108
    %p110 = scmp.le.s32.totalorder 1, %s8
    %p111 = scmp.lt.s32.totalorder %s8, 3
    %p112 = pnand %p110, %p111
    %p113 = pneg %p112
    // Predicated region
    $region9: #{_dropblock_forward.3} parent=5 // pred_check
      _
    $region10: #{_dropblock_forward.3} parent=5 // pred_check_branch
      %115 = sbr.rel (%p112) target = $region12
    $region11: #{_dropblock_forward.3} parent=5 // pred_region
      %s116 = ssub.s32 %s8, 1
    $region12: #{_dropblock_forward.3} parent=5 // pred_fallthru
      _
    %p117 = scmp.lt.s32.totalorder %s8, 2
    // Predicated region
    $region13: #{_dropblock_forward.3} parent=5 // pred_check
      %p118 = pneg %p117
    $region14: #{_dropblock_forward.3} parent=5 // pred_check_branch
      %120 = sbr.rel (%p118) target = $region16
    $region15: #{_dropblock_forward.3} parent=5 // pred_region
      // Predicated region
      $region17: #{_dropblock_forward.3} parent=15 // pred_check
        %p121 = pneg %p42
      $region18: #{_dropblock_forward.3} parent=15 // pred_check_branch
        %123 = sbr.rel (%p121) target = $region20
      $region19: #{_dropblock_forward.3} parent=15 // pred_region
        %p124 = scmp.lt.s32.totalorder %s15, 1
        %s125 = scalar_select %p124, %s15, 1
        %p126 = scmp.lt.s32.totalorder %s16, 0
        %s127 = scalar_select %p126, %s16, 0
        %s128 = smul.addr %s127, 2
        %s129 = smul.addr %s125, 2
        %s130 = sadd.s32 %s128, %s129
        %s131 = smul.addr %s130, 4
        %s132 = scalar_lea.vmem %s0, %s131
      $region20: #{_dropblock_forward.3} parent=15 // pred_fallthru
        _
      // Predicated region
      $region21: #{_dropblock_forward.3} parent=15 // pred_check
        %p133 = pneg %p68
      $region22: #{_dropblock_forward.3} parent=15 // pred_check_branch
        %135 = sbr.rel (%p133) target = $region24
      $region23: #{_dropblock_forward.3} parent=15 // pred_region
        %p136 = scmp.lt.s32.totalorder %s15, 1
        %s137 = scalar_select %p136, %s15, 1
        %s138 = smul.addr %s137, 2
        %s139 = scalar_lea.vmem %s1, %s138
      $region24: #{_dropblock_forward.3} parent=15 // pred_fallthru
        _
    $region16: #{_dropblock_forward.3} parent=5 // pred_fallthru
      _
    %p140 = scmp.le.s32.totalorder 1, %s8
    %p141 = scmp.lt.s32.totalorder %s8, 3
    %p142 = pnand %p140, %p141
    %p143 = pneg %p142
    // Predicated region
    $region25: #{_dropblock_forward.3} parent=5 // pred_check
      _
    $region26: #{_dropblock_forward.3} parent=5 // pred_check_branch
      %145 = sbr.rel (%p142) target = $region28
    $region27: #{_dropblock_forward.3} parent=5 // pred_region
      %s146 = ssub.s32 %s8, 1
      %p147 = scmp.lt.s32.totalorder %s17, 1
      %s148 = scalar_select %p147, %s17, 1
      %p149 = scmp.lt.s32.totalorder %s18, 0
      %s150 = scalar_select %p149, %s18, 0
      %s151 = smul.addr %s150, 2
      %s152 = smul.addr %s148, 2
      %s153 = sadd.s32 %s151, %s152
      %s154 = smul.addr %s153, 4
      %s155 = scalar_lea.vmem %s0, %s154
      %p156 = pneg %p48
      %p157 = pneg %p45
      %p158 = scmp.lt.s32.totalorder %s17, 1
      %s159 = scalar_select %p158, %s17, 1
      %s160 = smul.addr %s159, 2
      %s161 = scalar_lea.vmem %s1, %s160
      %p162 = pneg %p74
      %p163 = pneg %p71
      %p164 = pneg %p102
      %p165 = pneg %p99
      %p166 = scmp.lt.s32.totalorder %s17, 1
      %s167 = scalar_select %p166, %s17, 1
      %p168 = scmp.lt.s32.totalorder %s18, 0
      %s169 = scalar_select %p168, %s18, 0
      %s170 = smul.addr %s169, 2
      %s171 = smul.addr %s167, 2
      %s172 = sadd.s32 %s170, %s171
      %s173 = smul.addr %s172, 4
      %s174 = scalar_lea.vmem %s2, %s173
      %p175 = scmp.lt.s32.totalorder %s17, 1
      %s176 = scalar_select %p175, %s17, 1
      %p177 = scmp.lt.s32.totalorder %s18, 0
      %s178 = scalar_select %p177, %s18, 0
      %s179 = smul.addr %s178, 2
      %s180 = smul.addr %s176, 2
      %s181 = sadd.s32 %s179, %s180
      %s182 = smul.addr %s181, 4
      %s183 = scalar_lea.vmem %s0, %s182
      %p184 = scmp.lt.s32.totalorder %s17, 1
      %s185 = scalar_select %p184, %s17, 1
      %s186 = smul.addr %s185, 2
      %s187 = scalar_lea.vmem %s1, %s186
      %p188 = scmp.lt.s32.totalorder %s17, 1
      %s189 = scalar_select %p188, %s17, 1
      %p190 = scmp.lt.s32.totalorder %s18, 0
      %s191 = scalar_select %p190, %s18, 0
      %s192 = smul.addr %s191, 2
      %s193 = smul.addr %s189, 2
      %s194 = sadd.s32 %s192, %s193
      %s195 = smul.addr %s194, 4
      %s196 = scalar_lea.vmem %s2, %s195
      %v197 = vld [vmem:[%s183] sm:$0xff]
      %v198 = vld [vmem:[%s187] sm:$0x3]
      %v200 = vlaneseq
      %v201 = vshrl.u32 %v200, 7
      %v202 = vsub.s32 0, %v201
      %v203 = vrot.slane %v198, %v202
      %v204 = vlaneseq
      %v205 = vshrl.u32 %v204, 7
      %v206 = vsub.s32 1, %v205
      %v207 = vrot.slane %v198, %v206
      %v208 = vcombine.low %v203, %v207
      %v210 = vmul.f32 %v197, %v208
      %211 = vst [vmem:[%s196] sm:$0xff] %v210
      %p212 = scmp.lt.s32.totalorder %s17, 1
      %s213 = scalar_select %p212, %s17, 1
      %p214 = scmp.lt.s32.totalorder %s18, 0
      %s215 = scalar_select %p214, %s18, 0
      %s216 = smul.addr %s215, 2
      %s217 = smul.addr %s213, 2
      %s218 = sadd.s32 %s216, %s217
      %s219 = smul.addr %s218, 4
      %s220 = scalar_lea.vmem %s2, %s219
      // Predicated region
      $region29: #{_dropblock_forward.3} parent=27 // pred_check
        %p221 = pneg %p99
      $region30: #{_dropblock_forward.3} parent=27 // pred_check_branch
        %223 = sbr.rel (%p221) target = $region32
      $region31: #{_dropblock_forward.3} parent=27 // pred_region
        _
      $region32: #{_dropblock_forward.3} parent=27 // pred_fallthru
        _
    $region28: #{_dropblock_forward.3} parent=5 // pred_fallthru
      _
    %p224 = scmp.le.s32.totalorder 2, %s8
    // Predicated region
    $region33: #{_dropblock_forward.3} parent=5 // pred_check
      %p225 = pneg %p224
    $region34: #{_dropblock_forward.3} parent=5 // pred_check_branch
      %227 = sbr.rel (%p225) target = $region36
    $region35: #{_dropblock_forward.3} parent=5 // pred_region
      %s228 = ssub.s32 %s8, 2
      // Predicated region
      $region37: #{_dropblock_forward.3} parent=35 // pred_check
        %p229 = pneg %p105
      $region38: #{_dropblock_forward.3} parent=35 // pred_check_branch
        %231 = sbr.rel (%p229) target = $region40
      $region39: #{_dropblock_forward.3} parent=35 // pred_region
        %p232 = scmp.lt.s32.totalorder %s19, 1
        %s233 = scalar_select %p232, %s19, 1
        %p234 = scmp.lt.s32.totalorder %s20, 0
        %s235 = scalar_select %p234, %s20, 0
        %s236 = smul.addr %s235, 2
        %s237 = smul.addr %s233, 2
        %s238 = sadd.s32 %s236, %s237
        %s239 = smul.addr %s238, 4
        %s240 = scalar_lea.vmem %s2, %s239
      $region40: #{_dropblock_forward.3} parent=35 // pred_fallthru
        _
    $region36: #{_dropblock_forward.3} parent=5 // pred_fallthru
      _
  $region6: #{_dropblock_forward.3} parent=0 // loop_footer
    %s12 = sadd.s32 1, %s8
  $region7: #{_dropblock_forward.3} parent=0 // loop_footer_branch
    %7 = sbr.rel target = $region3
  $region8: #{_dropblock_forward.3} parent=0 // loop_exit
    _

// kernel: _dropblock_forward.2
$region0: #{_dropblock_forward.2}
  #allocation0 [shape = 'u32[]', space=smem, size = 0x4, offset = 0x4, fixed_abs, tag = 'smem constant byte address 0x4 - core index']
  #allocation1 [shape = 'u32[144,128]{1,0:T(1,128)}', space=vmem, size = 0x12000, scoped, tag = 'internal scratch']
  #allocation2 [shape = 'f32[1]{0:T(128)S(6)}', space=smem, size = 0x200, scoped, tag = 'scoped memory for _dropblock_forward.2']
  %s0 = inlined_call_operand.<no memory space> [shape: f32[1], index: 0, kind: input, shape index: {}]
  %s1 = inlined_call_operand.vmem [shape: f32[32,16], index: 1, kind: input, shape index: {}]
  %s2 = inlined_call_operand.vmem [shape: f32[2,16,16], index: 2, kind: output, shape index: {}]
  %s3 = sld [smem:[#allocation0]]
  $region18: #{_dropblock_forward.2} parent=0
    _
  %s5 = ssub.s32 1, %s3
  %s6 = scalar_select 0, %s5, %s3
  %7 = sst [smem:[#allocation2]] %s0
  // Predicated region
  $region2: #{_dropblock_forward.2} parent=0 // pred_check
    _
  $region3: #{_dropblock_forward.2} parent=0 // pred_check_branch
    %9 = sbr.rel (0) target = $region5
  $region4: #{_dropblock_forward.2} parent=0 // pred_region
    _
  $region5: #{_dropblock_forward.2} parent=0 // pred_fallthru
    _
  // Predicated region
  $region6: #{_dropblock_forward.2} parent=0 // pred_check
    _
  $region7: #{_dropblock_forward.2} parent=0 // pred_check_branch
    %11 = sbr.rel (0) target = $region9
  $region8: #{_dropblock_forward.2} parent=0 // pred_region
    _
  $region9: #{_dropblock_forward.2} parent=0 // pred_fallthru
    _
  %s13 = sld [smem:[#allocation2]]
  %v14 = vld [vmem:[%s1] sm:$0xff]
  %v15 = vld [vmem:[%s1 + $0x8] sm:$0xff]
  %v16 = vld [vmem:[%s1 + $0x10] sm:$0xff]
  %v17 = vld [vmem:[%s1 + $0x18] sm:$0xff]
  %v18 = vstv %s13
  %vm19 = vcmp.lt.f32.partialorder %v14, %v18
  %vm20 = vcmp.lt.f32.partialorder %v15, %v18
  %vm21 = vcmp.lt.f32.partialorder %v16, %v18
  %vm22 = vcmp.lt.f32.partialorder %v17, %v18
  %v23 = vsel %vm19, 1, 0
  %v24 = vsel %vm20, 1, 0
  %v25 = vsel %vm21, 1, 0
  %v26 = vsel %vm22, 1, 0
  %v27 = vcvt.s32.f32 %v23
  %v28 = vcvt.s32.f32 %v24
  %v29 = vcvt.s32.f32 %v25
  %v30 = vcvt.s32.f32 %v26
  %v31 = vpack.c.bf16 %v28, %v27
  %v32 = vpack.c.bf16 %v30, %v29
  %v33 = vlaneseq
  %v34 = vshrl.u32 %v33, 7
  %v35 = vadd.s32 %v34, 8
  %v36 = vlaneseq
  %v37 = vand.u32 %v36, 127
  %v38 = vsub.s32 %v34, %v37
  %v39 = vsub.s32 %v35, %v37
  %vm40 = vcmp.lt.s32.totalorder %v38, 0
  %v41 = vsub.s32 0, %v38
  %v42 = vsel %vm40, %v41, %v38
  %vm43 = vcmp.lt.s32.totalorder %v39, 0
  %v44 = vsub.s32 0, %v39
  %v45 = vsel %vm43, %v44, %v39
  %vm46 = vcmp.le.s32.totalorder %v42, 1
  %vm47 = vcmp.le.s32.totalorder %v45, 1
  %v48 = vsel %vm46, 1, 0
  %v49 = vsel %vm47, 1, 0
  %v50 = vcvt.s32.f32 %v48
  %v51 = vcvt.s32.f32 %v49
  %v52 = vpack.c.bf16 %v51, %v50
  %vm53 = vcmask 130048
  %v55 = vsel %vm53, %v31, 0
  %v58 = vsel %vm53, %v32, 0
  %60 = vmatprep.subr.bf16.mxu0 0
  %61 = vmatpush1.bf16.msra.mxu0 %v52
  %62 = vmatprep.subr.bf16.mxu0 0
  %63 = vmatpush1.bf16.msra.mxu0 0
  %64 = vmatprep.subr.bf16.mxu0 0
  %65 = vmatpush1.bf16.msra.mxu0 0
  %66 = vmatprep.subr.bf16.mxu0 0
  %67 = vmatpush1.bf16.msra.mxu0 0
  %68 = vmatprep.subr.bf16.mxu0 0
  %69 = vmatpush1.bf16.msra.mxu0 0
  %70 = vmatprep.subr.bf16.mxu0 0
  %71 = vmatpush1.bf16.msra.mxu0 0
  %72 = vmatprep.subr.bf16.mxu0 0
  %73 = vmatpush1.bf16.msra.mxu0 0
  %74 = vmatprep.subr.bf16.mxu0 0
  %75 = vmatpush1.bf16.msra.mxu0 0
  %76 = vmatprep.subr.bf16.mxu0 0
  %77 = vmatpush1.bf16.msra.mxu0 0
  %78 = vmatprep.subr.bf16.mxu0 0
  %79 = vmatpush1.bf16.msra.mxu0 0
  %80 = vmatprep.subr.bf16.mxu0 0
  %81 = vmatpush1.bf16.msra.mxu0 0
  %82 = vmatprep.subr.bf16.mxu0 0
  %83 = vmatpush1.bf16.msra.mxu0 0
  %84 = vmatprep.subr.bf16.mxu0 0
  %85 = vmatpush1.bf16.msra.mxu0 0
  %86 = vmatprep.subr.bf16.mxu0 0
  %87 = vmatpush1.bf16.msra.mxu0 0
  %88 = vmatprep.subr.bf16.mxu0 0
  %89 = vmatpush1.bf16.msra.mxu0 0
  %90 = vmatprep.subr.bf16.mxu0 0
  %91 = vmatpush1.bf16.msra.mxu0 0
  %92 = vmatprep.mubr.bf16.mxu0 0
  %93 = vmatmul.mubr.bf16.gmra.mrb[0].mxu0 %v55
  %v94 = vpop.f32.mrb[0].mxu0
  %v95 = vadd.f32 0.0, %v94
  %v96 = vpop.f32.mrb[0].mxu0
  %v97 = vpop.f32.mrb[0].mxu0
  %v98 = vadd.f32 0.0, %v97
  %v99 = vpop.f32.mrb[0].mxu0
  %100 = vmatprep.mubr.bf16.mxu0 0
  %101 = vmatmul.mubr.bf16.gmra.mrb[0].mxu0 %v58
  %v102 = vpop.f32.mrb[0].mxu0
  %v103 = vadd.f32 0.0, %v102
  %v104 = vpop.f32.mrb[0].mxu0
  %v105 = vpop.f32.mrb[0].mxu0
  %v106 = vadd.f32 0.0, %v105
  %v107 = vpop.f32.mrb[0].mxu0
  %108 = vdwg.mxu0
  %v109 = vpack.c.bf16 %v98, %v95
  %v111 = vsel %vm53, %v52, 0
  %113 = vmatprep.subr.bf16.mxu0 0
  %114 = vmatpush1.bf16.msra.mxu0 %v109
  %115 = vmatprep.subr.bf16.mxu0 0
  %116 = vmatpush1.bf16.msra.mxu0 0
  %117 = vmatprep.subr.bf16.mxu0 0
  %118 = vmatpush1.bf16.msra.mxu0 0
  %119 = vmatprep.subr.bf16.mxu0 0
  %120 = vmatpush1.bf16.msra.mxu0 0
  %121 = vmatprep.subr.bf16.mxu0 0
  %122 = vmatpush1.bf16.msra.mxu0 0
  %123 = vmatprep.subr.bf16.mxu0 0
  %124 = vmatpush1.bf16.msra.mxu0 0
  %125 = vmatprep.subr.bf16.mxu0 0
  %126 = vmatpush1.bf16.msra.mxu0 0
  %127 = vmatprep.subr.bf16.mxu0 0
  %128 = vmatpush1.bf16.msra.mxu0 0
  %129 = vmatprep.subr.bf16.mxu0 0
  %130 = vmatpush1.bf16.msra.mxu0 0
  %131 = vmatprep.subr.bf16.mxu0 0
  %132 = vmatpush1.bf16.msra.mxu0 0
  %133 = vmatprep.subr.bf16.mxu0 0
  %134 = vmatpush1.bf16.msra.mxu0 0
  %135 = vmatprep.subr.bf16.mxu0 0
  %136 = vmatpush1.bf16.msra.mxu0 0
  %137 = vmatprep.subr.bf16.mxu0 0
  %138 = vmatpush1.bf16.msra.mxu0 0
  %139 = vmatprep.subr.bf16.mxu0 0
  %140 = vmatpush1.bf16.msra.mxu0 0
  %141 = vmatprep.subr.bf16.mxu0 0
  %142 = vmatpush1.bf16.msra.mxu0 0
  %143 = vmatprep.subr.bf16.mxu0 0
  %144 = vmatpush1.bf16.msra.mxu0 0
  %145 = vmatprep.mubr.bf16.mxu0 0
  %146 = vmatmul.mubr.bf16.gmra.mrb[0].mxu0 %v111
  %v147 = vpop.f32.mrb[0].mxu0
  %v148 = vadd.f32 0.0, %v147
  %v149 = vpop.f32.mrb[0].mxu0
  %v150 = vpop.f32.mrb[0].mxu0
  %v151 = vadd.f32 0.0, %v150
  %v152 = vpop.f32.mrb[0].mxu0
  %153 = vdwg.mxu0
  %vm154 = vcmp.lt.f32.partialorder %v148, 0.5
  %vm155 = vcmp.lt.f32.partialorder %v151, 0.5
  %v156 = vsel %vm154, 1, 0
  %v157 = vsel %vm155, 1, 0
  %v158 = vcvt.s32.f32 %v156
  %v159 = vcvt.s32.f32 %v157
  %160 = vst.msk [vmem:[%s2] sm:$0xff] %vm53, %v158
  %161 = vst.msk [vmem:[%s2 + $0x8] sm:$0xff] %vm53, %v159
  %v162 = vadd.f32 %v158, 0.0
  %v163 = vadd.f32 %v159, 0.0
  %v164 = vpack.c.bf16 %v106, %v103
  %165 = vmatprep.subr.bf16.mxu0 0
  %166 = vmatpush1.bf16.msra.mxu0 %v164
  %167 = vmatprep.subr.bf16.mxu0 0
  %168 = vmatpush1.bf16.msra.mxu0 0
  %169 = vmatprep.subr.bf16.mxu0 0
  %170 = vmatpush1.bf16.msra.mxu0 0
  %171 = vmatprep.subr.bf16.mxu0 0
  %172 = vmatpush1.bf16.msra.mxu0 0
  %173 = vmatprep.subr.bf16.mxu0 0
  %174 = vmatpush1.bf16.msra.mxu0 0
  %175 = vmatprep.subr.bf16.mxu0 0
  %176 = vmatpush1.bf16.msra.mxu0 0
  %177 = vmatprep.subr.bf16.mxu0 0
  %178 = vmatpush1.bf16.msra.mxu0 0
  %179 = vmatprep.subr.bf16.mxu0 0
  %180 = vmatpush1.bf16.msra.mxu0 0
  %181 = vmatprep.subr.bf16.mxu0 0
  %182 = vmatpush1.bf16.msra.mxu0 0
  %183 = vmatprep.subr.bf16.mxu0 0
  %184 = vmatpush1.bf16.msra.mxu0 0
  %185 = vmatprep.subr.bf16.mxu0 0
  %186 = vmatpush1.bf16.msra.mxu0 0
  %187 = vmatprep.subr.bf16.mxu0 0
  %188 = vmatpush1.bf16.msra.mxu0 0
  %189 = vmatprep.subr.bf16.mxu0 0
  %190 = vmatpush1.bf16.msra.mxu0 0
  %191 = vmatprep.subr.bf16.mxu0 0
  %192 = vmatpush1.bf16.msra.mxu0 0
  %193 = vmatprep.subr.bf16.mxu0 0
  %194 = vmatpush1.bf16.msra.mxu0 0
  %195 = vmatprep.subr.bf16.mxu0 0
  %196 = vmatpush1.bf16.msra.mxu0 0
  %197 = vmatprep.mubr.bf16.mxu0 0
  %198 = vmatmul.mubr.bf16.gmra.mrb[0].mxu0 %v111
  %v199 = vpop.f32.mrb[0].mxu0
  %v200 = vadd.f32 0.0, %v199
  %v201 = vpop.f32.mrb[0].mxu0
  %v202 = vpop.f32.mrb[0].mxu0
  %v203 = vadd.f32 0.0, %v202
  %v204 = vpop.f32.mrb[0].mxu0
  %205 = vdwg.mxu0
  %vm206 = vcmp.lt.f32.partialorder %v200, 0.5
  %vm207 = vcmp.lt.f32.partialorder %v203, 0.5
  %v208 = vsel %vm206, 1, 0
  %v209 = vsel %vm207, 1, 0
  %v210 = vcvt.s32.f32 %v208
  %v211 = vcvt.s32.f32 %v209
  %s212 = scalar_lea.vmem %s2, 16
  %213 = vst.msk [vmem:[%s212] sm:$0xff] %vm53, %v210
  %214 = vst.msk [vmem:[%s212 + $0x8] sm:$0xff] %vm53, %v211
  %v215 = vadd.f32 %v162, %v210
  %v216 = vadd.f32 %v163, %v211
  %v217 = vsel %vm53, %v215, 0.0
  %v218 = vsel %vm53, %v216, 0.0
  %v219 = vadd.f32 %v217, %v218
  %220 = vadd.xlane.f32.xlu0 %v219
  %v221 = vpop.xlane.xlu0 %220
  %v222 = vrot.slane %v221, 4
  %v223 = vadd.f32 %v221, %v222
  %v224 = vrot.slane %v223, 2
  %v225 = vadd.f32 %v223, %v224
  %v226 = vrot.slane %v225, 1
  %v227 = vadd.f32 %v225, %v226
  %s228 = vtos %v227
  %s229 = smax.f32 %s228, 1.0
  %v230 = vstv %s229
  %v231 = vrcp.pop %v230
  %s232 = vtos %v231
  %s233 = smul.f32 512.0, %s232
  %v234 = vld [vmem:[%s2] sm:$0xff]
  %v235 = vld [vmem:[%s2 + $0x8] sm:$0xff]
  %v236 = vstv %s233
  %v237 = vmul.f32 %v234, %v236
  %v238 = vmul.f32 %v235, %v236
  %239 = vst.msk [vmem:[%s2] sm:$0xff] %vm53, %v237
  %240 = vst.msk [vmem:[%s2 + $0x8] sm:$0xff] %vm53, %v238
  %v241 = vld [vmem:[%s212] sm:$0xff]
  %v242 = vld [vmem:[%s212 + $0x8] sm:$0xff]
  %v243 = vmul.f32 %v241, %v236
  %v244 = vmul.f32 %v242, %v236
  %245 = vst.msk [vmem:[%s212] sm:$0xff] %vm53, %v243
  %246 = vst.msk [vmem:[%s212 + $0x8] sm:$0xff] %vm53, %v244
  // Predicated region
  $region10: #{_dropblock_forward.2} parent=0 // pred_check
    _
  $region11: #{_dropblock_forward.2} parent=0 // pred_check_branch
    %248 = sbr.rel (0) target = $region13
  $region12: #{_dropblock_forward.2} parent=0 // pred_region
    _
  $region13: #{_dropblock_forward.2} parent=0 // pred_fallthru
    _
  // Predicated region
  $region14: #{_dropblock_forward.2} parent=0 // pred_check
    _
  $region15: #{_dropblock_forward.2} parent=0 // pred_check_branch
    %250 = sbr.rel (0) target = $region17
  $region16: #{_dropblock_forward.2} parent=0 // pred_region
    _
  $region17: #{_dropblock_forward.2} parent=0 // pred_fallthru
    _

</llo_original>
